<compile_context>
chip_gen: v7x
topology: tpu7x:2x2x1
jax: 0.10.0
libtpu: 0.0.40
codegen_flags: <defaults>
</compile_context>

<pallas_src>
import functools
import math

import jax
import jax.numpy as jnp
from jax.experimental import pallas as pl
from jax.experimental.pallas import tpu as pltpu


def _conv1x1_kernel(w_ref, x_ref, o_ref, *, relu):
    # w_ref: (C_out, C_in)   x_ref: (1, C_in, TL)   o_ref: (1, C_out, TL)
    y = jnp.dot(w_ref[...], x_ref[0], preferred_element_type=jnp.float32)
    if relu:
        y = jnp.maximum(y, 0.0)
    o_ref[0] = y.astype(o_ref.dtype)


def _pick_lane_tile(c_in, c_out, itemsize, weight_bytes,
                    budget_bytes=16 * 1024 * 1024, max_tile=2048):
    """Lane-tile width: multiple of 128; double-buffered x/out tiles + weight fit VMEM."""
    avail = max(budget_bytes - 2 * weight_bytes, 2 * 1024 * 1024)
    per_lane = 2 * itemsize * (c_in + c_out)        # double-buffered x tile + out tile
    tl = avail // max(per_lane, 1)
    return max(128, min(max_tile, (tl // 128) * 128))
    # TODO(synk): for very wide channels (C_in >~ 4096) add a C_in (K) grid axis
    # with an f32 VMEM accumulator instead of shrinking the lane tile.


def _conv1x1_pallas(w2d, x3, tile, out_dtype, relu):
    """x3: (B', C_in, N) -> (B', C_out, N), tiled over the lane (N) axis."""
    bp, c_in, n = x3.shape
    c_out = w2d.shape[0]

    if n <= tile:
        tile = n                               # single full-width block (always legal)
    pad = (-n) % tile
    if pad:
        # Keep every block full so all stores are unmasked, lane-dense vst.
        x3 = jnp.pad(x3, ((0, 0), (0, 0), (0, pad)))
    n_pad = n + pad
    grid = (bp, n_pad // tile)

    out = pl.pallas_call(
        functools.partial(_conv1x1_kernel, relu=relu),
        out_shape=jax.ShapeDtypeStruct((bp, c_out, n_pad), out_dtype),
        grid=grid,
        in_specs=[
            # weight: same (small) block every step -> stays resident in VMEM
            pl.BlockSpec((c_out, c_in), lambda b, l: (0, 0)),
            # input: one lane-dense tile per step
            pl.BlockSpec((1, c_in, tile), lambda b, l: (b, 0, l)),
        ],
        out_specs=pl.BlockSpec((1, c_out, tile), lambda b, l: (b, 0, l)),
        compiler_params=pltpu.CompilerParams(
            # both axes independent -> megacore / dual-TC sharding on v7x
            dimension_semantics=("parallel", "parallel"),
            vmem_limit_bytes=32 * 1024 * 1024,
        ),
    )(w2d, x3)

    if pad:
        out = out[:, :, :n]
    return out


class InitializedConv1d:
    """JAX/Pallas port of Initialized_Conv1d (kernel_size=1, groups=1, bias=False)."""

    def __init__(self, in_channels, out_channels, kernel_size=1, relu=False,
                 stride=1, padding=0, groups=1, bias=False, key=None,
                 compute_dtype=None):
        assert kernel_size == 1 and stride == 1 and padding == 0 and groups == 1 and not bias, \
            "This Pallas port covers the pointwise (kernel_size=1) configuration used by the module."
        # TODO(synk): kernel_size>1 / groups>1 / bias Conv1d paths are not implemented here.
        self.in_channels = in_channels
        self.out_channels = out_channels
        self.relu = bool(relu)
        self.compute_dtype = compute_dtype     # e.g. jnp.bfloat16 to halve HBM traffic
        if key is None:
            key = jax.random.PRNGKey(0)

        # Conv1d weight shape: (out_channels, in_channels, kernel_size=1)
        fan_in = in_channels * kernel_size
        fan_out = out_channels * kernel_size
        if self.relu:
            # kaiming_normal_(nonlinearity='relu'): std = sqrt(2 / fan_in)
            std = math.sqrt(2.0 / fan_in)
            w = std * jax.random.normal(key, (out_channels, in_channels, 1), dtype=jnp.float32)
        else:
            # xavier_uniform_: bound = sqrt(6 / (fan_in + fan_out))
            bound = math.sqrt(6.0 / (fan_in + fan_out))
            w = jax.random.uniform(key, (out_channels, in_channels, 1),
                                   minval=-bound, maxval=bound, dtype=jnp.float32)
        self.weight = w  # (C_out, C_in, 1), matches PyTorch layout

    def __call__(self, x):
        # x: (B, C_in, L)
        B, C_in, L = x.shape
        assert C_in == self.in_channels
        C_out = self.out_channels
        out_dtype = x.dtype

        w2d = self.weight[:, :, 0]                      # (C_out, C_in)
        if self.compute_dtype is not None:
            # bf16 operands, f32 accumulation in-kernel, output in caller dtype.
            w2d = w2d.astype(self.compute_dtype)
            x = x.astype(self.compute_dtype)

        itemsize = max(jnp.dtype(x.dtype).itemsize, jnp.dtype(out_dtype).itemsize)
        weight_bytes = C_out * C_in * jnp.dtype(w2d.dtype).itemsize
        tile = _pick_lane_tile(C_in, C_out, itemsize, weight_bytes)

        if L >= 128:
            # Tile the length axis directly: grid over (batch, L tiles).
            return _conv1x1_pallas(w2d, x, tile, out_dtype, self.relu)

        # Small L: fold batch into the lane axis so the output stays lane-dense
        # and one matmul covers all B*L positions.
        x3 = jnp.transpose(x, (1, 0, 2)).reshape(1, C_in, B * L)
        out = _conv1x1_pallas(w2d, x3, tile, out_dtype, self.relu)   # (1, C_out, B*L)
        return jnp.transpose(out.reshape(C_out, B, L), (1, 0, 2))


def _reference(x, weight, relu):
    # Plain-JAX reference of F.conv1d(x, weight) with kernel_size=1, no bias.
    y = jnp.einsum("oi,bil->bol", weight[:, :, 0], x.astype(jnp.float32))
    return jnp.maximum(y, 0.0) if relu else y


if __name__ == "__main__":
    key = jax.random.PRNGKey(0)
    kx, kx2, kw1, kw2, kw3 = jax.random.split(key, 5)

    # Small-L case (batch folded into lanes): B=2, C_in=4, C_out=8, L=16.
    B, C_in, C_out, L = 2, 4, 8, 16
    x = jax.random.normal(kx, (B, C_in, L), dtype=jnp.float32)

    conv_lin = InitializedConv1d(C_in, C_out, kernel_size=1, relu=False, key=kw1)
    y_lin = jax.block_until_ready(conv_lin(x))
    ref_lin = _reference(x, conv_lin.weight, relu=False)

    conv_relu = InitializedConv1d(C_in, C_out, kernel_size=1, relu=True, key=kw2)
    y_relu = jax.block_until_ready(conv_relu(x))
    ref_relu = _reference(x, conv_relu.weight, relu=True)

    assert y_lin.shape == (B, C_out, L) and y_relu.shape == (B, C_out, L)
    assert jnp.allclose(y_lin, ref_lin, atol=1e-5, rtol=1e-5)
    assert jnp.allclose(y_relu, ref_relu, atol=1e-5, rtol=1e-5)

    # L >= 128 case (length tiled, grid over (batch, L tiles)).
    B2, C_in2, C_out2, L2 = 2, 8, 16, 256
    x2 = jax.random.normal(kx2, (B2, C_in2, L2), dtype=jnp.float32)
    conv_big = InitializedConv1d(C_in2, C_out2, kernel_size=1, relu=True, key=kw3)
    y_big = jax.block_until_ready(conv_big(x2))
    ref_big = _reference(x2, conv_big.weight, relu=True)
    assert y_big.shape == (B2, C_out2, L2)
    assert jnp.allclose(y_big, ref_big, atol=1e-5, rtol=1e-5)

    # bf16-compute path (halves streaming HBM traffic, f32 accumulation).
    conv_bf16 = InitializedConv1d(C_in2, C_out2, kernel_size=1, relu=True, key=kw3,
                                  compute_dtype=jnp.bfloat16)
    y_bf16 = jax.block_until_ready(conv_bf16(x2))
    assert y_bf16.dtype == x2.dtype
    assert jnp.allclose(y_bf16, ref_big, atol=5e-2, rtol=5e-2)

    print("KERNEL_OK")
</pallas_src>

<mosaic_0001>
module attributes {stable_mosaic.version = 11 : i64} {
  func.func @_conv1x1_kernel(%arg0: i32, %arg1: i32, %arg2: memref<8x4xf32, #tpu.memory_space<vmem>>, %arg3: memref<1x4x32xf32, #tpu.memory_space<vmem>>, %arg4: memref<1x8x32xf32, #tpu.memory_space<vmem>>) attributes {dimension_semantics = [#tpu.dimension_semantics<parallel>, #tpu.dimension_semantics<parallel>], iteration_bounds = array<i64: 1, 1>, scalar_prefetch = 0 : i64, scratch_operands = 0 : i64, tpu.core_type = #tpu.core_type<tc>, window_params = [{pipeline_mode = #tpu.pipeline_mode<synchronous>, transform_indices = @transform_0, window_bounds = array<i64: 8, 4>}, {transform_indices = @transform_1, window_bounds = array<i64: 1, 4, 32>}, {transform_indices = @transform_2, window_bounds = array<i64: 1, 8, 32>}]} {
    %c0 = arith.constant 0 : index
    %c0_0 = arith.constant 0 : index
    %0 = vector.load %arg2[%c0, %c0_0] : memref<8x4xf32, #tpu.memory_space<vmem>>, vector<8x4xf32>
    %c0_1 = arith.constant 0 : index
    %c0_2 = arith.constant 0 : index
    %c0_3 = arith.constant 0 : index
    %1 = vector.load %arg3[%c0_1, %c0_2, %c0_3] : memref<1x4x32xf32, #tpu.memory_space<vmem>>, vector<1x4x32xf32>
    %2 = vector.shape_cast %1 : vector<1x4x32xf32> to vector<4x32xf32>
    %cst = arith.constant dense<0.000000e+00> : vector<8x32xf32>
    %3 = tpu.matmul %0, %2, %cst {dimension_numbers = #tpu.dot_dimension_numbers<[1], [0], [0], [1], [0, 0, 1, 1], [], []>} : vector<8x4xf32>, vector<4x32xf32>, vector<8x32xf32> -> vector<8x32xf32>
    %c0_4 = arith.constant 0 : index
    %c0_5 = arith.constant 0 : index
    %c0_6 = arith.constant 0 : index
    %4 = vector.load %arg4[%c0_4, %c0_5, %c0_6] : memref<1x8x32xf32, #tpu.memory_space<vmem>>, vector<1x8x32xf32>
    %5 = vector.shape_cast %4 : vector<1x8x32xf32> to vector<8x32xf32>
    %6 = vector.shape_cast %3 : vector<8x32xf32> to vector<1x8x32xf32>
    tpu.vector_store %arg4[%c0_4, %c0_5, %c0_6], %6 {strides = array<i32>} : memref<1x8x32xf32, #tpu.memory_space<vmem>>, vector<1x8x32xf32>,
    return
  }
  func.func @transform_0(%arg0: i32, %arg1: i32) -> (i32, i32) {
    %c0_i32 = arith.constant 0 : i32
    %c0_i32_0 = arith.constant 0 : i32
    %c0_i32_1 = arith.constant 0 : i32
    return %c0_i32, %c0_i32_0 : i32, i32
  }
  func.func @transform_1(%arg0: i32, %arg1: i32) -> (i32, i32, i32) {
    %c0_i32 = arith.constant 0 : i32
    %c0_i32_0 = arith.constant 0 : i32
    return %arg0, %c0_i32, %arg1 : i32, i32, i32
  }
  func.func @transform_2(%arg0: i32, %arg1: i32) -> (i32, i32, i32) {
    %c0_i32 = arith.constant 0 : i32
    %c0_i32_0 = arith.constant 0 : i32
    return %arg0, %c0_i32, %arg1 : i32, i32, i32
  }
}

</mosaic_0001>

<llo_original>
// kernel: tpu_custom_call.1
$region0: #{tpu_custom_call.1}
  #allocation0 [shape = 'u32[]', space=smem, size = 0x4, offset = 0x4, fixed_abs, tag = 'smem constant byte address 0x4 - core index']
  #allocation1 [shape = 'u32[144,128]{1,0:T(1,128)}', space=vmem, size = 0x12000, scoped, tag = 'internal scratch']
  %s0 = inlined_call_operand.vmem [shape: f32[8,4], index: 0, kind: input, shape index: {}]
  %s1 = inlined_call_operand.vmem [shape: f32[1,4,32], index: 1, kind: input, shape index: {}]
  %s2 = inlined_call_operand.hbm [shape: f32[1,8,32], index: 2, kind: output, shape index: {}]
  %s3 = sld [smem:[#allocation0]]
  $region18: #{tpu_custom_call.1} parent=0
    _
  %s5 = ssub.s32 1, %s3
  %s6 = scalar_select 0, %s5, %s3
  $region1: #{tpu_custom_call.1} parent=0
    #allocation2 [shape = 'u8[4096]{0}', space=vmem, size = 0x1000, scoped, tag = 'output window, operand 0, single buffered']
    #allocation3 [shape = 's32[1]{0}', space=sflag, size = 0x4, scoped, tag = 'scoped memory for tpu_custom_call.1']
    %7 = vsyncpa [#allocation3], 0
    // Predicated region
    $region2: #{tpu_custom_call.1} parent=1 // pred_check
      _
    $region3: #{tpu_custom_call.1} parent=1 // pred_check_branch
      %9 = sbr.rel (0) target = $region5
    $region4: #{tpu_custom_call.1} parent=1 // pred_region
      _
    $region5: #{tpu_custom_call.1} parent=1 // pred_fallthru
      _
    // Predicated region
    $region6: #{tpu_custom_call.1} parent=1 // pred_check
      _
    $region7: #{tpu_custom_call.1} parent=1 // pred_check_branch
      %11 = sbr.rel (0) target = $region9
    $region8: #{tpu_custom_call.1} parent=1 // pred_region
      _
    $region9: #{tpu_custom_call.1} parent=1 // pred_fallthru
      _
    %v12 = vld [vmem:[%s0] sm:$0xff]
    %v13 = vld [vmem:[%s1] sm:$0xf]
    %vm14 = vcmask 31744
    %v16 = vsel %vm14, %v12, 0
    %vm18 = vcmask 1043456
    %v20 = vsel %vm18, %v13, 0
    %22 = vmatprep.subr.mxu0 0.0
    %23 = vmatpush1.msra.mxu0 %v20
    %24 = vmatprep.subr.mxu0 0.0
    %25 = vmatpush1.msra.mxu0 0.0
    %26 = vmatprep.subr.mxu0 0.0
    %27 = vmatpush1.msra.mxu0 0.0
    %28 = vmatprep.subr.mxu0 0.0
    %29 = vmatpush1.msra.mxu0 0.0
    %30 = vmatprep.subr.mxu0 0.0
    %31 = vmatpush1.msra.mxu0 0.0
    %32 = vmatprep.subr.mxu0 0.0
    %33 = vmatpush1.msra.mxu0 0.0
    %34 = vmatprep.subr.mxu0 0.0
    %35 = vmatpush1.msra.mxu0 0.0
    %36 = vmatprep.subr.mxu0 0.0
    %37 = vmatpush1.msra.mxu0 0.0
    %38 = vmatprep.subr.mxu0 0.0
    %39 = vmatpush1.msra.mxu0 0.0
    %40 = vmatprep.subr.mxu0 0.0
    %41 = vmatpush1.msra.mxu0 0.0
    %42 = vmatprep.subr.mxu0 0.0
    %43 = vmatpush1.msra.mxu0 0.0
    %44 = vmatprep.subr.mxu0 0.0
    %45 = vmatpush1.msra.mxu0 0.0
    %46 = vmatprep.subr.mxu0 0.0
    %47 = vmatpush1.msra.mxu0 0.0
    %48 = vmatprep.subr.mxu0 0.0
    %49 = vmatpush1.msra.mxu0 0.0
    %50 = vmatprep.subr.mxu0 0.0
    %51 = vmatpush1.msra.mxu0 0.0
    %52 = vmatprep.subr.mxu0 0.0
    %53 = vmatpush1.msra.mxu0 0.0
    %54 = vmatprep.subr.mxu0 0.0
    %55 = vmatpush1.msra.mxu0 0.0
    %56 = vmatprep.subr.mxu0 0.0
    %57 = vmatpush1.msra.mxu0 0.0
    %58 = vmatprep.subr.mxu0 0.0
    %59 = vmatpush1.msra.mxu0 0.0
    %60 = vmatprep.subr.mxu0 0.0
    %61 = vmatpush1.msra.mxu0 0.0
    %62 = vmatprep.subr.mxu0 0.0
    %63 = vmatpush1.msra.mxu0 0.0
    %64 = vmatprep.subr.mxu0 0.0
    %65 = vmatpush1.msra.mxu0 0.0
    %66 = vmatprep.subr.mxu0 0.0
    %67 = vmatpush1.msra.mxu0 0.0
    %68 = vmatprep.subr.mxu0 0.0
    %69 = vmatpush1.msra.mxu0 0.0
    %70 = vmatprep.subr.mxu0 0.0
    %71 = vmatpush1.msra.mxu0 0.0
    %72 = vmatprep.subr.mxu0 0.0
    %73 = vmatpush1.msra.mxu0 0.0
    %74 = vmatprep.subr.mxu0 0.0
    %75 = vmatpush1.msra.mxu0 0.0
    %76 = vmatprep.subr.mxu0 0.0
    %77 = vmatpush1.msra.mxu0 0.0
    %78 = vmatprep.subr.mxu0 0.0
    %79 = vmatpush1.msra.mxu0 0.0
    %80 = vmatprep.subr.mxu0 0.0
    %81 = vmatpush1.msra.mxu0 0.0
    %82 = vmatprep.subr.mxu0 0.0
    %83 = vmatpush1.msra.mxu0 0.0
    %84 = vmatprep.subr.mxu0 0.0
    %85 = vmatpush1.msra.mxu0 0.0
    %86 = vmatprep.mubr.f32.mxu0 0.0
    %87 = vmatmul.mubr.f32.gmra.mrb[0].mxu0 %v16
    %v88 = vpop.f32.mrb[0].mxu0
    %v89 = vadd.f32 0.0, %v88
    %v90 = vpop.f32.mrb[0].mxu0
    %91 = vdwg.mxu0
    %vm92 = vcmask 261120
    %93 = vst.msk [vmem:[#allocation2] sm:$0xff] %vm92, %v89
    // Predicated region
    $region10: #{tpu_custom_call.1} parent=1 // pred_check
      _
    $region11: #{tpu_custom_call.1} parent=1 // pred_check_branch
      %95 = sbr.rel (0) target = $region13
    $region12: #{tpu_custom_call.1} parent=1 // pred_region
      %s97 = ssub.s32 128, 128
      %98 = vsyncadd [#allocation3], %s97
      %s100 = sshll.u32 [#allocation2], 4
      %s101 = int_to_ptr.vmem [resolvable:$true] %s100
      %103 = dma.vmem_to_hbm [thread:$0]  %s101, 128, %s2, [#allocation3]
    $region13: #{tpu_custom_call.1} parent=1 // pred_fallthru
      _
    // Predicated region
    $region14: #{tpu_custom_call.1} parent=1 // pred_check
      _
    $region15: #{tpu_custom_call.1} parent=1 // pred_check_branch
      %105 = sbr.rel (0) target = $region17
    $region16: #{tpu_custom_call.1} parent=1 // pred_region
      %106 = dma.done [#allocation3], 128
    $region17: #{tpu_custom_call.1} parent=1 // pred_fallthru
      _
    %107 = vsyncpa [#allocation3], 1

</llo_original>
